<compile_context>
chip_gen: v7x
topology: tpu7x:2x2x1
jax: 0.10.0
libtpu: 0.0.40
codegen_flags: <defaults>
</compile_context>

<pallas_src>
import functools

import jax
import jax.numpy as jnp
from jax import lax
from jax.experimental import pallas as pl
from jax.experimental.pallas import tpu as pltpu


def _round_up(x: int, m: int) -> int:
    return (x + m - 1) // m * m


def _flash_self_attn_kernel(
    xq_ref, xkv_ref, wq_ref, wkv_ref,        # inputs
    o_ref,                                   # output
    q_sc, m_sc, l_sc, acc_sc,                # VMEM scratch
    *,
    input_dim: int,
    d_k: int,
    seq_len: int,
    kv_block: int,
    mask_kv: bool,
    mxu_dtype,
):
    j = pl.program_id(1)

    @pl.when(j == 0)
    def _init():
        # Project this query tile once per q-tile. The 1/input_dim**2 scale is folded
        # into q (commutes exactly through the scores matmul; far fewer elements than
        # scaling the (tq, tk) score tile every KV step).
        q = jnp.dot(
            xq_ref[...].astype(mxu_dtype),
            wq_ref[...].astype(mxu_dtype),
            preferred_element_type=jnp.float32,
        )
        q_sc[...] = (q * (1.0 / float(input_dim) ** 2)).astype(mxu_dtype)
        m_sc[...] = jnp.full_like(m_sc, -jnp.inf)
        l_sc[...] = jnp.zeros_like(l_sc)
        acc_sc[...] = jnp.zeros_like(acc_sc)

    # Fused K/V projection for this KV tile: one MXU matmul with a wider N dim.
    kv = jnp.dot(
        xkv_ref[...].astype(mxu_dtype),
        wkv_ref[...].astype(mxu_dtype),
        preferred_element_type=jnp.float32,
    )
    k = kv[:, :d_k]
    v = kv[:, d_k:]

    # scores = q @ k^T, contracting the feature axis directly (no explicit transpose).
    s = lax.dot_general(
        q_sc[...],
        k.astype(mxu_dtype),
        dimension_numbers=(((1,), (1,)), ((), ())),
        preferred_element_type=jnp.float32,
    )  # (tq, tk) f32

    if mask_kv:
        # Sequence was padded to a tile multiple; mask out padded key positions.
        kv_pos = j * kv_block + lax.broadcasted_iota(jnp.int32, s.shape, 1)
        s = jnp.where(kv_pos < seq_len, s, -1e30)

    # Online softmax update.
    m_new = jnp.maximum(m_sc[...], s.max(axis=-1, keepdims=True))
    alpha = jnp.exp(m_sc[...] - m_new)
    p = jnp.exp(s - m_new)
    l_sc[...] = alpha * l_sc[...] + p.sum(axis=-1, keepdims=True)
    acc_sc[...] = alpha * acc_sc[...] + jnp.dot(
        p.astype(mxu_dtype), v.astype(mxu_dtype),
        preferred_element_type=jnp.float32,
    )
    m_sc[...] = m_new

    @pl.when(j == pl.num_programs(1) - 1)
    def _finalize():
        inv_l = pl.reciprocal(l_sc[...], approx=True)
        o_ref[...] = (acc_sc[...] * inv_l).astype(o_ref.dtype)


def self_attention(x, w_query, w_key, w_value, *, block=256, mxu_dtype=jnp.bfloat16):
    """x: (S, D). w_query: (D, Dq), w_key: (D, Dk), w_value: (D, Dv). Returns (S, Dv).

    block: query/KV tile length (sweep per chip; 256 fits comfortably inside the v7x
    64 MiB / 32 MiB-scoped VMEM budget with double-buffered inputs for typical D).
    """
    S, D = x.shape
    Dq = w_query.shape[1]
    Dk = w_key.shape[1]
    Dv = w_value.shape[1]
    if Dq != Dk:
        raise ValueError("q_dim must equal k_dim for query @ key^T")
    if w_query.shape[0] != D or w_key.shape[0] != D or w_value.shape[0] != D:
        raise ValueError("weight matrices must have leading dim == input_dim")

    # Tile length: multiple of 8 sublanes; whole (padded) sequence if it is small.
    t = min(block, _round_up(S, 8))
    S_pad = _round_up(S, t)
    n_tiles = S_pad // t

    x_p = jnp.pad(x, ((0, S_pad - S), (0, 0))) if S_pad != S else x
    # Fuse the K and V projection weights once, wrapper-side.
    w_kv = jnp.concatenate([w_key, w_value], axis=1)  # (D, Dk + Dv)

    kernel = functools.partial(
        _flash_self_attn_kernel,
        input_dim=D,
        d_k=Dk,
        seq_len=S,
        kv_block=t,
        mask_kv=(S_pad != S),
        mxu_dtype=mxu_dtype,
    )

    itemsize = jnp.dtype(x.dtype).itemsize
    cost = pl.CostEstimate(
        flops=2 * S_pad * D * (Dq + Dk + Dv) + 2 * S_pad * S_pad * (Dk + Dv),
        transcendentals=S_pad * S_pad,
        bytes_accessed=(2 * S_pad * D + D * (Dq + Dk + Dv) + S_pad * Dv) * itemsize,
    )

    out = pl.pallas_call(
        kernel,
        out_shape=jax.ShapeDtypeStruct((S_pad, Dv), x.dtype),
        grid_spec=pltpu.PrefetchScalarGridSpec(
            num_scalar_prefetch=0,
            grid=(n_tiles, n_tiles),  # (query tiles, KV reduction tiles)
            in_specs=[
                pl.BlockSpec((t, D), lambda i, j: (i, 0)),        # x rows for this q tile
                pl.BlockSpec((t, D), lambda i, j: (j, 0)),        # x rows for this KV tile
                pl.BlockSpec((D, Dq), lambda i, j: (0, 0)),       # w_query (resident)
                pl.BlockSpec((D, Dk + Dv), lambda i, j: (0, 0)),  # fused [w_key | w_value]
            ],
            out_specs=pl.BlockSpec((t, Dv), lambda i, j: (i, 0)),
            scratch_shapes=[
                pltpu.VMEM((t, Dq), mxu_dtype),    # scaled q tile (MXU operand dtype)
                pltpu.VMEM((t, 1), jnp.float32),   # running max
                pltpu.VMEM((t, 1), jnp.float32),   # running denominator
                pltpu.VMEM((t, Dv), jnp.float32),  # output accumulator
            ],
        ),
        compiler_params=pltpu.CompilerParams(
            dimension_semantics=("parallel", "arbitrary"),
        ),
        cost_estimate=cost,
    )(x_p, x_p, w_query, w_kv)

    return out[:S] if S_pad != S else out


def _reference(x, wq, wk, wv):
    D = x.shape[1]
    q = x @ wq
    k = (x @ wk).T
    v = x @ wv
    scores = (q @ k) / float(D) ** 2
    attn = jax.nn.softmax(scores, axis=-1)
    return attn @ v


if __name__ == "__main__":
    key = jax.random.PRNGKey(0)
    kx, kq, kk, kv, kx2 = jax.random.split(key, 5)

    # Small shapes consistent with the module: seq=8, input_dim=32, q=k=v=16.
    S, D, DQ, DK, DV = 8, 32, 16, 16, 16
    x = jax.random.normal(kx, (S, D), dtype=jnp.float32)
    w_query = jax.random.normal(kq, (D, DQ), dtype=jnp.float32)
    w_key = jax.random.normal(kk, (D, DK), dtype=jnp.float32)
    w_value = jax.random.normal(kv, (D, DV), dtype=jnp.float32)

    out = self_attention(x, w_query, w_key, w_value)
    jax.block_until_ready(out)
    ref = _reference(x, w_query, w_key, w_value)
    assert out.shape == (S, DV)
    # bf16 MXU operands (f32 accumulation) => modest tolerance vs the exact-f32 reference.
    assert jnp.allclose(out, ref, atol=1e-1, rtol=1e-1), "mismatch vs JAX reference (small)"

    # Second check: exercises multi-tile grid, KV reduction loop and padding/masking.
    S2 = 300
    x2 = jax.random.normal(kx2, (S2, D), dtype=jnp.float32)
    out2 = self_attention(x2, w_query, w_key, w_value, block=128)
    jax.block_until_ready(out2)
    ref2 = _reference(x2, w_query, w_key, w_value)
    assert out2.shape == (S2, DV)
    assert jnp.allclose(out2, ref2, atol=1e-1, rtol=1e-1), "mismatch vs JAX reference (tiled)"

    print("KERNEL_OK")
</pallas_src>

<mosaic_0001>
module attributes {stable_mosaic.version = 11 : i64} {
  func.func @_flash_self_attn_kernel(%arg0: i32, %arg1: i32, %arg2: memref<8x32xf32, #tpu.memory_space<vmem>>, %arg3: memref<8x32xf32, #tpu.memory_space<vmem>>, %arg4: memref<32x16xf32, #tpu.memory_space<vmem>>, %arg5: memref<32x32xf32, #tpu.memory_space<vmem>>, %arg6: memref<8x16xf32, #tpu.memory_space<vmem>>, %arg7: memref<8x16xbf16, #tpu.memory_space<vmem>>, %arg8: memref<8x1xf32, #tpu.memory_space<vmem>>, %arg9: memref<8x1xf32, #tpu.memory_space<vmem>>, %arg10: memref<8x16xf32, #tpu.memory_space<vmem>>) attributes {dimension_semantics = [#tpu.dimension_semantics<parallel>, #tpu.dimension_semantics<arbitrary>], iteration_bounds = array<i64: 1, 1>, scalar_prefetch = 0 : i64, scratch_operands = 4 : i64, tpu.core_type = #tpu.core_type<tc>, window_params = [{transform_indices = @transform_0, window_bounds = array<i64: 8, 32>}, {transform_indices = @transform_1, window_bounds = array<i64: 8, 32>}, {pipeline_mode = #tpu.pipeline_mode<synchronous>, transform_indices = @transform_2, window_bounds = array<i64: 32, 16>}, {pipeline_mode = #tpu.pipeline_mode<synchronous>, transform_indices = @transform_3, window_bounds = array<i64: 32, 32>}, {transform_indices = @transform_4, window_bounds = array<i64: 8, 16>}]} {
    %c0_i32 = arith.constant 0 : i32
    %0 = arith.cmpi eq, %arg1, %c0_i32 : i32
    %1 = arith.extui %0 : i1 to i32
    %c0_i32_0 = arith.constant 0 : i32
    %2 = arith.cmpi ne, %1, %c0_i32_0 : i32
    scf.if %2 {
      %c0_26 = arith.constant 0 : index
      %c0_27 = arith.constant 0 : index
      %41 = vector.load %arg2[%c0_26, %c0_27] : memref<8x32xf32, #tpu.memory_space<vmem>>, vector<8x32xf32>
      %42 = arith.truncf %41 : vector<8x32xf32> to vector<8x32xbf16>
      %c0_28 = arith.constant 0 : index
      %c0_29 = arith.constant 0 : index
      %43 = vector.load %arg4[%c0_28, %c0_29] : memref<32x16xf32, #tpu.memory_space<vmem>>, vector<32x16xf32>
      %44 = arith.truncf %43 : vector<32x16xf32> to vector<32x16xbf16>
      %cst_30 = arith.constant dense<0.000000e+00> : vector<8x16xf32>
      %45 = tpu.matmul %42, %44, %cst_30 {dimension_numbers = #tpu.dot_dimension_numbers<[1], [0], [0], [1], [0, 0, 1, 1], [], []>} : vector<8x32xbf16>, vector<32x16xbf16>, vector<8x16xf32> -> vector<8x16xf32>
      %cst_31 = arith.constant 9.765625E-4 : f32
      %46 = vector.broadcast %cst_31 : f32 to vector<8x16xf32>
      %47 = arith.mulf %45, %46 : vector<8x16xf32>
      %48 = arith.truncf %47 : vector<8x16xf32> to vector<8x16xbf16>
      %c0_32 = arith.constant 0 : index
      %c0_33 = arith.constant 0 : index
      %49 = vector.load %arg7[%c0_32, %c0_33] : memref<8x16xbf16, #tpu.memory_space<vmem>>, vector<8x16xbf16>
      tpu.vector_store %arg7[%c0_32, %c0_33], %48 {strides = array<i32>} : memref<8x16xbf16, #tpu.memory_space<vmem>>, vector<8x16xbf16>,
      %cst_34 = arith.constant 0xFF800000 : f32
      %50 = vector.broadcast %cst_34 : f32 to vector<8x1xf32>
      %c0_35 = arith.constant 0 : index
      %c0_36 = arith.constant 0 : index
      %51 = vector.load %arg8[%c0_35, %c0_36] : memref<8x1xf32, #tpu.memory_space<vmem>>, vector<8x1xf32>
      tpu.vector_store %arg8[%c0_35, %c0_36], %50 {strides = array<i32>} : memref<8x1xf32, #tpu.memory_space<vmem>>, vector<8x1xf32>,
      %cst_37 = arith.constant 0.000000e+00 : f32
      %52 = vector.broadcast %cst_37 : f32 to vector<8x1xf32>
      %c0_38 = arith.constant 0 : index
      %c0_39 = arith.constant 0 : index
      %53 = vector.load %arg9[%c0_38, %c0_39] : memref<8x1xf32, #tpu.memory_space<vmem>>, vector<8x1xf32>
      tpu.vector_store %arg9[%c0_38, %c0_39], %52 {strides = array<i32>} : memref<8x1xf32, #tpu.memory_space<vmem>>, vector<8x1xf32>,
      %cst_40 = arith.constant 0.000000e+00 : f32
      %54 = vector.broadcast %cst_40 : f32 to vector<8x16xf32>
      %c0_41 = arith.constant 0 : index
      %c0_42 = arith.constant 0 : index
      %55 = vector.load %arg10[%c0_41, %c0_42] : memref<8x16xf32, #tpu.memory_space<vmem>>, vector<8x16xf32>
      tpu.vector_store %arg10[%c0_41, %c0_42], %54 {strides = array<i32>} : memref<8x16xf32, #tpu.memory_space<vmem>>, vector<8x16xf32>,
    } else {
    }
    %c0 = arith.constant 0 : index
    %c0_1 = arith.constant 0 : index
    %3 = vector.load %arg3[%c0, %c0_1] : memref<8x32xf32, #tpu.memory_space<vmem>>, vector<8x32xf32>
    %4 = arith.truncf %3 : vector<8x32xf32> to vector<8x32xbf16>
    %c0_2 = arith.constant 0 : index
    %c0_3 = arith.constant 0 : index
    %5 = vector.load %arg5[%c0_2, %c0_3] : memref<32x32xf32, #tpu.memory_space<vmem>>, vector<32x32xf32>
    %6 = arith.truncf %5 : vector<32x32xf32> to vector<32x32xbf16>
    %cst = arith.constant dense<0.000000e+00> : vector<8x32xf32>
    %7 = tpu.matmul %4, %6, %cst {dimension_numbers = #tpu.dot_dimension_numbers<[1], [0], [0], [1], [0, 0, 1, 1], [], []>} : vector<8x32xbf16>, vector<32x32xbf16>, vector<8x32xf32> -> vector<8x32xf32>
    %8 = vector.extract_strided_slice %7 {offsets = [0, 0], sizes = [8, 16], strides = [1, 1]} : vector<8x32xf32> to vector<8x16xf32>
    %9 = vector.extract_strided_slice %7 {offsets = [0, 16], sizes = [8, 16], strides = [1, 1]} : vector<8x32xf32> to vector<8x16xf32>
    %c0_4 = arith.constant 0 : index
    %c0_5 = arith.constant 0 : index
    %10 = vector.load %arg7[%c0_4, %c0_5] : memref<8x16xbf16, #tpu.memory_space<vmem>>, vector<8x16xbf16>
    %11 = arith.truncf %8 : vector<8x16xf32> to vector<8x16xbf16>
    %cst_6 = arith.constant dense<0.000000e+00> : vector<8x8xf32>
    %12 = tpu.matmul %10, %11, %cst_6 {dimension_numbers = #tpu.dot_dimension_numbers<[1], [1], [0], [0], [0, 0, 1, 0], [], []>} : vector<8x16xbf16>, vector<8x16xbf16>, vector<8x8xf32> -> vector<8x8xf32>
    %c0_7 = arith.constant 0 : index
    %c0_8 = arith.constant 0 : index
    %13 = vector.load %arg8[%c0_7, %c0_8] : memref<8x1xf32, #tpu.memory_space<vmem>>, vector<8x1xf32>
    %cst_9 = arith.constant dense<0xFF800000> : vector<8xf32>
    %14 = vector.multi_reduction <maximumf>, %12, %cst_9 [1] : vector<8x8xf32> to vector<8xf32>
    %15 = vector.shape_cast %14 : vector<8xf32> to vector<8x1xf32>
    %16 = arith.maximumf %13, %15 : vector<8x1xf32>
    %c0_10 = arith.constant 0 : index
    %c0_11 = arith.constant 0 : index
    %17 = vector.load %arg8[%c0_10, %c0_11] : memref<8x1xf32, #tpu.memory_space<vmem>>, vector<8x1xf32>
    %18 = arith.subf %17, %16 : vector<8x1xf32>
    %19 = math.exp %18 : vector<8x1xf32>
    %20 = vector.broadcast %16 : vector<8x1xf32> to vector<8x8xf32>
    %21 = arith.subf %12, %20 : vector<8x8xf32>
    %22 = math.exp %21 : vector<8x8xf32>
    %c0_12 = arith.constant 0 : index
    %c0_13 = arith.constant 0 : index
    %23 = vector.load %arg9[%c0_12, %c0_13] : memref<8x1xf32, #tpu.memory_space<vmem>>, vector<8x1xf32>
    %24 = arith.mulf %19, %23 : vector<8x1xf32>
    %cst_14 = arith.constant dense<0.000000e+00> : vector<8xf32>
    %25 = vector.multi_reduction <add>, %22, %cst_14 [1] : vector<8x8xf32> to vector<8xf32>
    %26 = vector.shape_cast %25 : vector<8xf32> to vector<8x1xf32>
    %27 = arith.addf %24, %26 : vector<8x1xf32>
    %c0_15 = arith.constant 0 : index
    %c0_16 = arith.constant 0 : index
    %28 = vector.load %arg9[%c0_15, %c0_16] : memref<8x1xf32, #tpu.memory_space<vmem>>, vector<8x1xf32>
    tpu.vector_store %arg9[%c0_15, %c0_16], %27 {strides = array<i32>} : memref<8x1xf32, #tpu.memory_space<vmem>>, vector<8x1xf32>,
    %c0_17 = arith.constant 0 : index
    %c0_18 = arith.constant 0 : index
    %29 = vector.load %arg10[%c0_17, %c0_18] : memref<8x16xf32, #tpu.memory_space<vmem>>, vector<8x16xf32>
    %30 = vector.broadcast %19 : vector<8x1xf32> to vector<8x16xf32>
    %31 = arith.mulf %30, %29 : vector<8x16xf32>
    %32 = arith.truncf %22 : vector<8x8xf32> to vector<8x8xbf16>
    %33 = arith.truncf %9 : vector<8x16xf32> to vector<8x16xbf16>
    %cst_19 = arith.constant dense<0.000000e+00> : vector<8x16xf32>
    %34 = tpu.matmul %32, %33, %cst_19 {dimension_numbers = #tpu.dot_dimension_numbers<[1], [0], [0], [1], [0, 0, 1, 1], [], []>} : vector<8x8xbf16>, vector<8x16xbf16>, vector<8x16xf32> -> vector<8x16xf32>
    %35 = arith.addf %31, %34 : vector<8x16xf32>
    %c0_20 = arith.constant 0 : index
    %c0_21 = arith.constant 0 : index
    %36 = vector.load %arg10[%c0_20, %c0_21] : memref<8x16xf32, #tpu.memory_space<vmem>>, vector<8x16xf32>
    tpu.vector_store %arg10[%c0_20, %c0_21], %35 {strides = array<i32>} : memref<8x16xf32, #tpu.memory_space<vmem>>, vector<8x16xf32>,
    %c0_22 = arith.constant 0 : index
    %c0_23 = arith.constant 0 : index
    %37 = vector.load %arg8[%c0_22, %c0_23] : memref<8x1xf32, #tpu.memory_space<vmem>>, vector<8x1xf32>
    tpu.vector_store %arg8[%c0_22, %c0_23], %16 {strides = array<i32>} : memref<8x1xf32, #tpu.memory_space<vmem>>, vector<8x1xf32>,
    %c0_i32_24 = arith.constant 0 : i32
    %38 = arith.cmpi eq, %arg1, %c0_i32_24 : i32
    %39 = arith.extui %38 : i1 to i32
    %c0_i32_25 = arith.constant 0 : i32
    %40 = arith.cmpi ne, %39, %c0_i32_25 : i32
    scf.if %40 {
      %c0_26 = arith.constant 0 : index
      %c0_27 = arith.constant 0 : index
      %41 = vector.load %arg9[%c0_26, %c0_27] : memref<8x1xf32, #tpu.memory_space<vmem>>, vector<8x1xf32>
      %42 = tpu.reciprocal %41 {approx = true} : vector<8x1xf32> -> vector<8x1xf32>
      %c0_28 = arith.constant 0 : index
      %c0_29 = arith.constant 0 : index
      %43 = vector.load %arg10[%c0_28, %c0_29] : memref<8x16xf32, #tpu.memory_space<vmem>>, vector<8x16xf32>
      %44 = vector.broadcast %42 : vector<8x1xf32> to vector<8x16xf32>
      %45 = arith.mulf %43, %44 : vector<8x16xf32>
      %c0_30 = arith.constant 0 : index
      %c0_31 = arith.constant 0 : index
      %46 = vector.load %arg6[%c0_30, %c0_31] : memref<8x16xf32, #tpu.memory_space<vmem>>, vector<8x16xf32>
      tpu.vector_store %arg6[%c0_30, %c0_31], %45 {strides = array<i32>} : memref<8x16xf32, #tpu.memory_space<vmem>>, vector<8x16xf32>,
    } else {
    }
    return
  }
  func.func @transform_0(%arg0: i32, %arg1: i32) -> (i32, i32) {
    %c0_i32 = arith.constant 0 : i32
    %c0_i32_0 = arith.constant 0 : i32
    return %arg0, %c0_i32 : i32, i32
  }
  func.func @transform_1(%arg0: i32, %arg1: i32) -> (i32, i32) {
    %c0_i32 = arith.constant 0 : i32
    %c0_i32_0 = arith.constant 0 : i32
    return %arg1, %c0_i32 : i32, i32
  }
  func.func @transform_2(%arg0: i32, %arg1: i32) -> (i32, i32) {
    %c0_i32 = arith.constant 0 : i32
    %c0_i32_0 = arith.constant 0 : i32
    %c0_i32_1 = arith.constant 0 : i32
    return %c0_i32, %c0_i32_0 : i32, i32
  }
  func.func @transform_3(%arg0: i32, %arg1: i32) -> (i32, i32) {
    %c0_i32 = arith.constant 0 : i32
    %c0_i32_0 = arith.constant 0 : i32
    %c0_i32_1 = arith.constant 0 : i32
    return %c0_i32, %c0_i32_0 : i32, i32
  }
  func.func @transform_4(%arg0: i32, %arg1: i32) -> (i32, i32) {
    %c0_i32 = arith.constant 0 : i32
    %c0_i32_0 = arith.constant 0 : i32
    return %arg0, %c0_i32 : i32, i32
  }
}

</mosaic_0001>

<llo_original>
// kernel: tpu_custom_call.1
$region0: #{tpu_custom_call.1}
  #allocation0 [shape = 'u32[]', space=smem, size = 0x4, offset = 0x4, fixed_abs, tag = 'smem constant byte address 0x4 - core index']
  #allocation1 [shape = 'u32[144,128]{1,0:T(1,128)}', space=vmem, size = 0x12000, scoped, tag = 'internal scratch']
  #allocation2 [shape = 'bf16[8,16]{1,0:T(8,128)(2,1)}', space=vmem, size = 0x800, scoped, tag = 'scratch operand']
  #allocation3 [shape = 'f32[8,1]{1,0:T(8,128)}', space=vmem, size = 0x1000, scoped, tag = 'scratch operand']
  #allocation4 [shape = 'f32[8,1]{1,0:T(8,128)}', space=vmem, size = 0x1000, scoped, tag = 'scratch operand']
  #allocation5 [shape = 'f32[8,16]{1,0:T(8,128)}', space=vmem, size = 0x1000, scoped, tag = 'scratch operand']
  %s0 = inlined_call_operand.vmem [shape: f32[8,32], index: 0, kind: input, shape index: {}]
  %s1 = inlined_call_operand.vmem [shape: f32[8,32], index: 1, kind: input, shape index: {}]
  %s2 = inlined_call_operand.vmem [shape: f32[32,16], index: 2, kind: input, shape index: {}]
  %s3 = inlined_call_operand.vmem [shape: f32[32,32], index: 3, kind: input, shape index: {}]
  %s4 = inlined_call_operand.hbm [shape: f32[8,16], index: 4, kind: output, shape index: {}]
  %s5 = sld [smem:[#allocation0]]
  $region34: #{tpu_custom_call.1} parent=0
    _
  %s7 = ssub.s32 1, %s5
  %s8 = scalar_select 0, %s7, %s5
  $region1: #{tpu_custom_call.1} parent=0
    #allocation6 [shape = 'u8[4096]{0}', space=vmem, size = 0x1000, scoped, tag = 'output window, operand 0, single buffered']
    #allocation7 [shape = 's32[1]{0}', space=sflag, size = 0x4, scoped, tag = 'scoped memory for tpu_custom_call.1']
    %9 = vsyncpa [#allocation7], 0
    // Predicated region
    $region2: #{tpu_custom_call.1} parent=1 // pred_check
      _
    $region3: #{tpu_custom_call.1} parent=1 // pred_check_branch
      %11 = sbr.rel (0) target = $region5
    $region4: #{tpu_custom_call.1} parent=1 // pred_region
      _
    $region5: #{tpu_custom_call.1} parent=1 // pred_fallthru
      _
    // Predicated region
    $region6: #{tpu_custom_call.1} parent=1 // pred_check
      _
    $region7: #{tpu_custom_call.1} parent=1 // pred_check_branch
      %13 = sbr.rel (0) target = $region9
    $region8: #{tpu_custom_call.1} parent=1 // pred_region
      _
    $region9: #{tpu_custom_call.1} parent=1 // pred_fallthru
      _
    // Predicated region
    $region10: #{tpu_custom_call.1} parent=1 // pred_check
      _
    $region11: #{tpu_custom_call.1} parent=1 // pred_check_branch
      %15 = sbr.rel (0) target = $region13
    $region12: #{tpu_custom_call.1} parent=1 // pred_region
      _
    $region13: #{tpu_custom_call.1} parent=1 // pred_fallthru
      _
    // Predicated region
    $region14: #{tpu_custom_call.1} parent=1 // pred_check
      _
    $region15: #{tpu_custom_call.1} parent=1 // pred_check_branch
      %17 = sbr.rel (0) target = $region17
    $region16: #{tpu_custom_call.1} parent=1 // pred_region
      _
    $region17: #{tpu_custom_call.1} parent=1 // pred_fallthru
      _
    %p19 = scmp.eq.s32.totalorder 0, 0
    // Predicated region
    $region18: #{tpu_custom_call.1} parent=1 // pred_check
      %p20 = pneg %p19
    $region19: #{tpu_custom_call.1} parent=1 // pred_check_branch
      %22 = sbr.rel (%p20) target = $region21
    $region20: #{tpu_custom_call.1} parent=1 // pred_region
      %v23 = vld [vmem:[%s0] sm:$0xff]
      %v24 = vpack.c.bf16 %v23, %v23
      %v25 = vld [vmem:[%s2] sm:$0xff]
      %v26 = vld [vmem:[%s2 + $0x8] sm:$0xff]
      %v27 = vld [vmem:[%s2 + $0x10] sm:$0xff]
      %v28 = vld [vmem:[%s2 + $0x18] sm:$0xff]
      %v29 = vpack.c.bf16 %v26, %v25
      %v30 = vpack.c.bf16 %v28, %v27
      %vm31 = vcmask 261120
      %v33 = vsel %vm31, %v24, 0
      %35 = vmatprep.subr.bf16.mxu0 0
      %36 = vmatpush1.bf16.msra.mxu0 %v29
      %37 = vmatprep.subr.bf16.mxu0 0
      %38 = vmatpush1.bf16.msra.mxu0 %v30
      %39 = vmatprep.subr.bf16.mxu0 0
      %40 = vmatpush1.bf16.msra.mxu0 0
      %41 = vmatprep.subr.bf16.mxu0 0
      %42 = vmatpush1.bf16.msra.mxu0 0
      %43 = vmatprep.subr.bf16.mxu0 0
      %44 = vmatpush1.bf16.msra.mxu0 0
      %45 = vmatprep.subr.bf16.mxu0 0
      %46 = vmatpush1.bf16.msra.mxu0 0
      %47 = vmatprep.subr.bf16.mxu0 0
      %48 = vmatpush1.bf16.msra.mxu0 0
      %49 = vmatprep.subr.bf16.mxu0 0
      %50 = vmatpush1.bf16.msra.mxu0 0
      %51 = vmatprep.subr.bf16.mxu0 0
      %52 = vmatpush1.bf16.msra.mxu0 0
      %53 = vmatprep.subr.bf16.mxu0 0
      %54 = vmatpush1.bf16.msra.mxu0 0
      %55 = vmatprep.subr.bf16.mxu0 0
      %56 = vmatpush1.bf16.msra.mxu0 0
      %57 = vmatprep.subr.bf16.mxu0 0
      %58 = vmatpush1.bf16.msra.mxu0 0
      %59 = vmatprep.subr.bf16.mxu0 0
      %60 = vmatpush1.bf16.msra.mxu0 0
      %61 = vmatprep.subr.bf16.mxu0 0
      %62 = vmatpush1.bf16.msra.mxu0 0
      %63 = vmatprep.subr.bf16.mxu0 0
      %64 = vmatpush1.bf16.msra.mxu0 0
      %65 = vmatprep.subr.bf16.mxu0 0
      %66 = vmatpush1.bf16.msra.mxu0 0
      %67 = vmatprep.mubr.bf16.mxu0 0
      %68 = vmatmul.mubr.bf16.gmra.mrb[0].mxu0 %v33
      %v69 = vpop.f32.mrb[0].mxu0
      %v70 = vadd.f32 0.0, %v69
      %v71 = vpop.f32.mrb[0].mxu0
      %v72 = vpop.f32.mrb[0].mxu0
      %v73 = vpop.f32.mrb[0].mxu0
      %74 = vdwg.mxu0
      %v75 = vmul.f32 %v70, 0.0009765625
      %v76 = vpack.c.bf16 %v75, %v75
      %vm77 = vcmask 125952
      %78 = vst.msk [vmem:[#allocation2] sm:$0xf] %vm77, %v76
      %vm79 = vcmask 7168
      %80 = vst.msk [vmem:[#allocation3] sm:$0xff] %vm79, -inf
      %81 = vst.msk [vmem:[#allocation4] sm:$0xff] %vm79, 0.0
      %vm82 = vcmask 130048
      %83 = vst.msk [vmem:[#allocation5] sm:$0xff] %vm82, 0.0
    $region21: #{tpu_custom_call.1} parent=1 // pred_fallthru
      _
    %v84 = vld [vmem:[%s1] sm:$0xff]
    %v85 = vpack.c.bf16 %v84, %v84
    %v86 = vld [vmem:[%s3] sm:$0xff]
    %v87 = vld [vmem:[%s3 + $0x8] sm:$0xff]
    %v88 = vld [vmem:[%s3 + $0x10] sm:$0xff]
    %v89 = vld [vmem:[%s3 + $0x18] sm:$0xff]
    %v90 = vpack.c.bf16 %v87, %v86
    %v91 = vpack.c.bf16 %v89, %v88
    %vm92 = vcmask 261120
    %v94 = vsel %vm92, %v85, 0
    %96 = vmatprep.subr.bf16.mxu0 0
    %97 = vmatpush1.bf16.msra.mxu0 %v90
    %98 = vmatprep.subr.bf16.mxu0 0
    %99 = vmatpush1.bf16.msra.mxu0 %v91
    %100 = vmatprep.subr.bf16.mxu0 0
    %101 = vmatpush1.bf16.msra.mxu0 0
    %102 = vmatprep.subr.bf16.mxu0 0
    %103 = vmatpush1.bf16.msra.mxu0 0
    %104 = vmatprep.subr.bf16.mxu0 0
    %105 = vmatpush1.bf16.msra.mxu0 0
    %106 = vmatprep.subr.bf16.mxu0 0
    %107 = vmatpush1.bf16.msra.mxu0 0
    %108 = vmatprep.subr.bf16.mxu0 0
    %109 = vmatpush1.bf16.msra.mxu0 0
    %110 = vmatprep.subr.bf16.mxu0 0
    %111 = vmatpush1.bf16.msra.mxu0 0
    %112 = vmatprep.subr.bf16.mxu0 0
    %113 = vmatpush1.bf16.msra.mxu0 0
    %114 = vmatprep.subr.bf16.mxu0 0
    %115 = vmatpush1.bf16.msra.mxu0 0
    %116 = vmatprep.subr.bf16.mxu0 0
    %117 = vmatpush1.bf16.msra.mxu0 0
    %118 = vmatprep.subr.bf16.mxu0 0
    %119 = vmatpush1.bf16.msra.mxu0 0
    %120 = vmatprep.subr.bf16.mxu0 0
    %121 = vmatpush1.bf16.msra.mxu0 0
    %122 = vmatprep.subr.bf16.mxu0 0
    %123 = vmatpush1.bf16.msra.mxu0 0
    %124 = vmatprep.subr.bf16.mxu0 0
    %125 = vmatpush1.bf16.msra.mxu0 0
    %126 = vmatprep.subr.bf16.mxu0 0
    %127 = vmatpush1.bf16.msra.mxu0 0
    %128 = vmatprep.mubr.bf16.mxu0 0
    %129 = vmatmul.mubr.bf16.gmra.mrb[0].mxu0 %v94
    %v130 = vpop.f32.mrb[0].mxu0
    %v131 = vadd.f32 0.0, %v130
    %v132 = vpop.f32.mrb[0].mxu0
    %v133 = vpop.f32.mrb[0].mxu0
    %v134 = vpop.f32.mrb[0].mxu0
    %135 = vdwg.mxu0
    %v136 = vld [vmem:[#allocation2] sm:$0xf]
    %v137 = vpack.c.bf16 %v131, %v131
    %vm138 = vcmask 130048
    %v140 = vsel %vm138, %v136, 0
    %v143 = vsel %vm138, %v137, 0
    %145 = vmatprep.subr.bf16.mxu0 0
    %146 = vmatpush1.bf16.xpose.msra.mxu0 %v143
    %147 = vmatprep.subr.bf16.mxu0 0
    %148 = vmatpush1.bf16.xpose.msra.mxu0 0
    %149 = vmatprep.subr.bf16.mxu0 0
    %150 = vmatpush1.bf16.xpose.msra.mxu0 0
    %151 = vmatprep.subr.bf16.mxu0 0
    %152 = vmatpush1.bf16.xpose.msra.mxu0 0
    %153 = vmatprep.subr.bf16.mxu0 0
    %154 = vmatpush1.bf16.xpose.msra.mxu0 0
    %155 = vmatprep.subr.bf16.mxu0 0
    %156 = vmatpush1.bf16.xpose.msra.mxu0 0
    %157 = vmatprep.subr.bf16.mxu0 0
    %158 = vmatpush1.bf16.xpose.msra.mxu0 0
    %159 = vmatprep.subr.bf16.mxu0 0
    %160 = vmatpush1.bf16.xpose.msra.mxu0 0
    %161 = vmatprep.subr.bf16.mxu0 0
    %162 = vmatpush1.bf16.xpose.msra.mxu0 0
    %163 = vmatprep.subr.bf16.mxu0 0
    %164 = vmatpush1.bf16.xpose.msra.mxu0 0
    %165 = vmatprep.subr.bf16.mxu0 0
    %166 = vmatpush1.bf16.xpose.msra.mxu0 0
    %167 = vmatprep.subr.bf16.mxu0 0
    %168 = vmatpush1.bf16.xpose.msra.mxu0 0
    %169 = vmatprep.subr.bf16.mxu0 0
    %170 = vmatpush1.bf16.xpose.msra.mxu0 0
    %171 = vmatprep.subr.bf16.mxu0 0
    %172 = vmatpush1.bf16.xpose.msra.mxu0 0
    %173 = vmatprep.subr.bf16.mxu0 0
    %174 = vmatpush1.bf16.xpose.msra.mxu0 0
    %175 = vmatprep.subr.bf16.mxu0 0
    %176 = vmatpush1.bf16.xpose.msra.mxu0 0
    %177 = vmatprep.mubr.bf16.mxu0 0
    %178 = vmatmul.mubr.bf16.gmra.mrb[0].mxu0 %v140
    %v179 = vpop.f32.mrb[0].mxu0
    %v180 = vadd.f32 0.0, %v179
    %v181 = vpop.f32.mrb[0].mxu0
    %v182 = vpop.f32.mrb[0].mxu0
    %v183 = vpop.f32.mrb[0].mxu0
    %184 = vdwg.mxu0
    %v185 = vld [vmem:[#allocation3] sm:$0xff]
    %vm186 = vcmask 64512
    %v187 = vsel %vm186, %v180, -inf
    %188 = vmax.xlane.f32.xlu0 %v187
    %v189 = vpop.xlane.xlu0 %188
    %v190 = vmax.f32 %v185, %v189
    %v191 = vsub.f32 %v185, %v190
    %v192 = vmul.f32 %v191, 1.442695
    %v193 = vpow.pop %v192
    %195 = vset.pattern.permute.xlu0 0
    %196 = vperm.xlu0 %195, %v190
    %v197 = vpop.permute.xlu0 %196
    %v199 = vsub.f32 %v180, %v197
    %v200 = vmul.f32 %v199, 1.442695
    %v201 = vpow.pop %v200
    %v202 = vld [vmem:[#allocation4] sm:$0xff]
    %v203 = vmul.f32 %v193, %v202
    %v204 = vsel %vm186, %v201, 0.0
    %205 = vadd.xlane.f32.xlu0 %v204
    %v206 = vpop.xlane.xlu0 %205
    %v207 = vadd.f32 %v203, %v206
    %vm208 = vcmask 7168
    %209 = vst.msk [vmem:[#allocation4] sm:$0xff] %vm208, %v207
    %v210 = vld [vmem:[#allocation5] sm:$0xff]
    %212 = vset.pattern.permute.xlu0 0
    %213 = vperm.xlu0 %212, %v193
    %v214 = vpop.permute.xlu0 %213
    %v216 = vmul.f32 %v214, %v210
    %v217 = vpack.c.bf16 %v201, %v201
    %219 = vrot.lane.b32.xlu0 %v137, 112
    %v220 = vpop.permute.xlu0 %219
    %v222 = vsel %vm186, %v217, 0
    %vm224 = vcmask 1043456
    %v226 = vsel %vm224, %v220, 0
    %228 = vmatprep.subr.bf16.mxu0 0
    %229 = vmatpush1.bf16.msra.mxu0 %v226
    %230 = vmatprep.subr.bf16.mxu0 0
    %231 = vmatpush1.bf16.msra.mxu0 0
    %232 = vmatprep.subr.bf16.mxu0 0
    %233 = vmatpush1.bf16.msra.mxu0 0
    %234 = vmatprep.subr.bf16.mxu0 0
    %235 = vmatpush1.bf16.msra.mxu0 0
    %236 = vmatprep.subr.bf16.mxu0 0
    %237 = vmatpush1.bf16.msra.mxu0 0
    %238 = vmatprep.subr.bf16.mxu0 0
    %239 = vmatpush1.bf16.msra.mxu0 0
    %240 = vmatprep.subr.bf16.mxu0 0
    %241 = vmatpush1.bf16.msra.mxu0 0
    %242 = vmatprep.subr.bf16.mxu0 0
    %243 = vmatpush1.bf16.msra.mxu0 0
    %244 = vmatprep.subr.bf16.mxu0 0
    %245 = vmatpush1.bf16.msra.mxu0 0
    %246 = vmatprep.subr.bf16.mxu0 0
    %247 = vmatpush1.bf16.msra.mxu0 0
    %248 = vmatprep.subr.bf16.mxu0 0
    %249 = vmatpush1.bf16.msra.mxu0 0
    %250 = vmatprep.subr.bf16.mxu0 0
    %251 = vmatpush1.bf16.msra.mxu0 0
    %252 = vmatprep.subr.bf16.mxu0 0
    %253 = vmatpush1.bf16.msra.mxu0 0
    %254 = vmatprep.subr.bf16.mxu0 0
    %255 = vmatpush1.bf16.msra.mxu0 0
    %256 = vmatprep.subr.bf16.mxu0 0
    %257 = vmatpush1.bf16.msra.mxu0 0
    %258 = vmatprep.subr.bf16.mxu0 0
    %259 = vmatpush1.bf16.msra.mxu0 0
    %260 = vmatprep.mubr.bf16.mxu0 0
    %261 = vmatmul.mubr.bf16.gmra.mrb[0].mxu0 %v222
    %v262 = vpop.f32.mrb[0].mxu0
    %v263 = vadd.f32 0.0, %v262
    %v264 = vpop.f32.mrb[0].mxu0
    %v265 = vpop.f32.mrb[0].mxu0
    %v266 = vpop.f32.mrb[0].mxu0
    %267 = vdwg.mxu0
    %v268 = vadd.f32 %v216, %v263
    %269 = vst.msk [vmem:[#allocation5] sm:$0xff] %vm138, %v268
    %270 = vst.msk [vmem:[#allocation3] sm:$0xff] %vm208, %v190
    // Predicated region
    $region22: #{tpu_custom_call.1} parent=1 // pred_check
      %p271 = pneg %p19
    $region23: #{tpu_custom_call.1} parent=1 // pred_check_branch
      %273 = sbr.rel (%p271) target = $region25
    $region24: #{tpu_custom_call.1} parent=1 // pred_region
      %v274 = vld [vmem:[#allocation4] sm:$0xff]
      %v275 = vrcp.pop %v274
      %v276 = vld [vmem:[#allocation5] sm:$0xff]
      %278 = vset.pattern.permute.xlu0 0
      %279 = vperm.xlu0 %278, %v275
      %v280 = vpop.permute.xlu0 %279
      %v282 = vmul.f32 %v276, %v280
      %283 = vst.msk [vmem:[#allocation6] sm:$0xff] %vm138, %v282
    $region25: #{tpu_custom_call.1} parent=1 // pred_fallthru
      _
    // Predicated region
    $region26: #{tpu_custom_call.1} parent=1 // pred_check
      _
    $region27: #{tpu_custom_call.1} parent=1 // pred_check_branch
      %285 = sbr.rel (0) target = $region29
    $region28: #{tpu_custom_call.1} parent=1 // pred_region
      %s287 = ssub.s32 128, 128
      %288 = vsyncadd [#allocation7], %s287
      %s290 = sshll.u32 [#allocation6], 4
      %s291 = int_to_ptr.vmem [resolvable:$true] %s290
      %293 = dma.vmem_to_hbm [thread:$0]  %s291, 128, %s4, [#allocation7]
    $region29: #{tpu_custom_call.1} parent=1 // pred_fallthru
      _
    // Predicated region
    $region30: #{tpu_custom_call.1} parent=1 // pred_check
      _
    $region31: #{tpu_custom_call.1} parent=1 // pred_check_branch
      %295 = sbr.rel (0) target = $region33
    $region32: #{tpu_custom_call.1} parent=1 // pred_region
      %296 = dma.done [#allocation7], 128
    $region33: #{tpu_custom_call.1} parent=1 // pred_fallthru
      _
    %297 = vsyncpa [#allocation7], 1

</llo_original>
